<compile_context>
chip_gen: v6e
topology: v6e:2x2x1
jax: 0.10.0
libtpu: 0.0.40
codegen_flags: <defaults>
</compile_context>

<pallas_src>
import functools

import jax
import jax.numpy as jnp
from jax.experimental import pallas as pl
from jax.experimental.pallas import tpu as pltpu

LANES = 128
SUBLANES = 8
ALPHA = 0.05


def _num_tensorcores():
    """2 TensorCores per device on v4/v5p/v7x, 1 on v5e/v6e."""
    try:
        kind = jax.devices()[0].device_kind.lower()
    except Exception:
        return 1
    if "v7" in kind or "v5p" in kind or "v4" in kind:
        return 2
    return 1


def _bce_blur_kernel(pred_ref, true_ref, out_ref, *,
                     total_rows, inv_alpha, tm, chunk, bpc):
    c = pl.program_id(0)   # parallel (core) axis
    i = pl.program_id(1)   # sequential reduction axis

    # out_ref is this core's (8, 128) partial-sum block; its block index only
    # depends on c, so it stays resident in VMEM across the whole i loop.
    @pl.when(i == 0)
    def _():
        out_ref[...] = jnp.zeros_like(out_ref)

    # Global row index of this tile's first row (unclamped, so phantom tiles
    # land fully past total_rows and mask to zero below).
    start = (c * bpc + i) * tm
    num_chunks = tm // chunk

    def chunk_loss(r0):
        x = pred_ref[pl.ds(r0, chunk), :].astype(jnp.float32)
        y = true_ref[pl.ds(r0, chunk), :].astype(jnp.float32)
        # Shared transcendental: e = exp(-|x|) feeds both BCE and sigmoid,
        # and denom = 1 + e is shared between log and reciprocal.
        e = jnp.exp(-jnp.abs(x))
        denom = 1.0 + e
        bce = jnp.maximum(x, 0.0) - x * y + jnp.log(denom)        # == log1p(e)
        p = jnp.where(x >= 0.0, 1.0, e) * pl.reciprocal(denom)    # sigmoid, exact
        alpha_factor = 1.0 - jnp.exp((p - y - 1.0) * inv_alpha)
        return bce * alpha_factor

    def fold(v):
        # (chunk, 128) -> (chunk//8, 8, 128) -> sum of vregs: pure VPU work.
        return v.reshape(-1, SUBLANES, LANES).sum(axis=0)

    acc0 = jnp.zeros((SUBLANES, LANES), jnp.float32)

    @pl.when(start + tm <= total_rows)
    def _():  # fully-valid tile: no mask work at all
        def body(j, acc):
            r0 = pl.multiple_of(j * chunk, chunk)
            return acc + fold(chunk_loss(r0))
        out_ref[...] += jax.lax.fori_loop(0, num_chunks, body, acc0, unroll=True)

    @pl.when(start + tm > total_rows)
    def _():  # tile crosses the end of the data: select out garbage rows
        def body(j, acc):
            r0 = pl.multiple_of(j * chunk, chunk)
            loss = chunk_loss(r0)
            rows_left = total_rows - (start + r0)
            row_ids = jax.lax.broadcasted_iota(jnp.int32, (chunk, 1), 0)
            # Select (not multiply): garbage rows may contain inf/NaN.
            loss = jnp.where(row_ids < rows_left, loss, 0.0)
            return acc + fold(loss)
        out_ref[...] += jax.lax.fori_loop(0, num_chunks, body, acc0, unroll=True)


@functools.partial(jax.jit, static_argnames=("alpha", "tm"))
def bce_blur_with_logits_loss(pred, true, alpha=ALPHA, tm=1024):
    assert pred.shape == true.shape
    n = pred.size

    pred_f = pred.reshape(-1)
    true_f = true.reshape(-1)

    # Only pad when n is not a multiple of 128 (rare for NN tensors).  Pad
    # values are chosen so padded elements contribute *exactly* zero:
    #   pred=0, true=-0.5  ->  sigmoid(0) - true - 1 == 0  ->  alpha_factor == 0.
    pad = (-n) % LANES
    if pad:
        pred_f = jnp.pad(pred_f, (0, pad))
        true_f = jnp.pad(true_f, (0, pad),
                         constant_values=jnp.asarray(-0.5, true_f.dtype))

    rows = pred_f.size // LANES
    pred_2d = pred_f.reshape(rows, LANES)
    true_2d = true_f.reshape(rows, LANES)

    # Tile height: multiple of 8 sublanes, shrunk for tiny inputs.
    tm_eff = min(tm, ((rows + SUBLANES - 1) // SUBLANES) * SUBLANES)
    # Inner-chunk height: largest multiple of 8 dividing tm_eff, capped at 256,
    # so each intermediate stays within a few dozen vregs (no VMEM spill).
    chunk = SUBLANES
    for cand in range(min(256, tm_eff), 0, -SUBLANES):
        if tm_eff % cand == 0:
            chunk = cand
            break

    num_cores = _num_tensorcores()
    nblocks = pl.cdiv(rows, tm_eff)
    bpc = pl.cdiv(nblocks, num_cores)      # blocks per core

    # Phantom tiles (past the last real block) re-read the last real block;
    # their rows are fully masked inside the kernel, so they add zero.
    def in_map(c, i):
        return (jnp.minimum(c * bpc + i, nblocks - 1), 0)

    kernel = functools.partial(
        _bce_blur_kernel,
        total_rows=rows,
        inv_alpha=1.0 / (alpha + 1e-4),
        tm=tm_eff,
        chunk=chunk,
        bpc=bpc,
    )

    partials = pl.pallas_call(
        kernel,
        out_shape=jax.ShapeDtypeStruct((num_cores * SUBLANES, LANES), jnp.float32),
        grid_spec=pltpu.PrefetchScalarGridSpec(
            num_scalar_prefetch=0,
            grid=(num_cores, bpc),
            in_specs=[
                pl.BlockSpec((tm_eff, LANES), in_map),
                pl.BlockSpec((tm_eff, LANES), in_map),
            ],
            out_specs=pl.BlockSpec((SUBLANES, LANES), lambda c, i: (c, 0)),
        ),
        compiler_params=pltpu.CompilerParams(
            dimension_semantics=("parallel", "arbitrary"),
        ),
    )(pred_2d, true_2d)

    # Tiny final cross-lane reduce + mean (fused into the same jit).
    return jnp.sum(partials) / n


def _reference(pred, true, alpha=ALPHA):
    x = pred.astype(jnp.float32)
    y = true.astype(jnp.float32)
    bce = jnp.maximum(x, 0.0) - x * y + jnp.log1p(jnp.exp(-jnp.abs(x)))
    p = jax.nn.sigmoid(x)
    dx = p - y
    af = 1.0 - jnp.exp((dx - 1.0) / (alpha + 1e-4))
    return jnp.mean(bce * af)


if __name__ == "__main__":
    key = jax.random.PRNGKey(0)
    k1, k2 = jax.random.split(key)
    # Small shape consistent with the module's elementwise-on-logits forward.
    shape = (2, 4, 16, 16)
    pred = jax.random.normal(k1, shape, dtype=jnp.float32)
    true = (jax.random.uniform(k2, shape, dtype=jnp.float32) > 0.5).astype(jnp.float32)

    out = bce_blur_with_logits_loss(pred, true)
    out = jax.block_until_ready(out)

    ref = _reference(pred, true)
    assert jnp.allclose(out, ref, atol=1e-5, rtol=1e-5), (out, ref)
    print("KERNEL_OK")
</pallas_src>

<mosaic_0001>
module attributes {stable_mosaic.version = 11 : i64} {
  func.func @_bce_blur_kernel(%arg0: i32, %arg1: i32, %arg2: memref<16x128xf32, #tpu.memory_space<vmem>>, %arg3: memref<16x128xf32, #tpu.memory_space<vmem>>, %arg4: memref<8x128xf32, #tpu.memory_space<vmem>>) attributes {dimension_semantics = [#tpu.dimension_semantics<parallel>, #tpu.dimension_semantics<arbitrary>], iteration_bounds = array<i64: 1, 1>, scalar_prefetch = 0 : i64, scratch_operands = 0 : i64, tpu.core_type = #tpu.core_type<tc>, window_params = [{transform_indices = @transform_0, window_bounds = array<i64: 16, 128>}, {transform_indices = @transform_1, window_bounds = array<i64: 16, 128>}, {transform_indices = @transform_2, window_bounds = array<i64: 8, 128>}]} {
    %c0_i32 = arith.constant 0 : i32
    %0 = arith.cmpi eq, %arg1, %c0_i32 : i32
    %1 = arith.extui %0 : i1 to i32
    %c0_i32_0 = arith.constant 0 : i32
    %2 = arith.cmpi ne, %1, %c0_i32_0 : i32
    scf.if %2 {
      %cst_7 = arith.constant 0.000000e+00 : f32
      %15 = vector.broadcast %cst_7 : f32 to vector<8x128xf32>
      %c0 = arith.constant 0 : index
      %c0_8 = arith.constant 0 : index
      %16 = vector.load %arg4[%c0, %c0_8] : memref<8x128xf32, #tpu.memory_space<vmem>>, vector<8x128xf32>
      tpu.vector_store %arg4[%c0, %c0_8], %15 {strides = array<i32>} : memref<8x128xf32, #tpu.memory_space<vmem>>, vector<8x128xf32>,
    } else {
    }
    %c1_i32 = arith.constant 1 : i32
    %3 = arith.muli %arg0, %c1_i32 : i32
    %4 = arith.addi %3, %arg1 : i32
    %c16_i32 = arith.constant 16 : i32
    %5 = arith.muli %4, %c16_i32 : i32
    %cst = arith.constant 0.000000e+00 : f32
    %6 = vector.broadcast %cst : f32 to vector<8x128xf32>
    %c16_i32_1 = arith.constant 16 : i32
    %7 = arith.addi %5, %c16_i32_1 : i32
    %c16_i32_2 = arith.constant 16 : i32
    %8 = arith.cmpi sle, %7, %c16_i32_2 : i32
    %9 = arith.extui %8 : i1 to i32
    %c0_i32_3 = arith.constant 0 : i32
    %10 = arith.cmpi ne, %9, %c0_i32_3 : i32
    scf.if %10 {
      %c0 = arith.constant 0 : index
      %c0_7 = arith.constant 0 : index
      %15 = vector.load %arg4[%c0, %c0_7] : memref<8x128xf32, #tpu.memory_space<vmem>>, vector<8x128xf32>
      %c0_i32_8 = arith.constant 0 : i32
      %c16_i32_9 = arith.constant 16 : i32
      %16 = arith.muli %c0_i32_8, %c16_i32_9 : i32
      %17 = tpu.assume_multiple %16, 16 : i32
      %18 = arith.index_cast %17 : i32 to index
      %c0_10 = arith.constant 0 : index
      %19 = vector.load %arg2[%18, %c0_10] : memref<16x128xf32, #tpu.memory_space<vmem>>, vector<16x128xf32>
      %20 = arith.index_cast %17 : i32 to index
      %c0_11 = arith.constant 0 : index
      %21 = vector.load %arg3[%20, %c0_11] : memref<16x128xf32, #tpu.memory_space<vmem>>, vector<16x128xf32>
      %22 = math.absf %19 : vector<16x128xf32>
      %cst_12 = arith.constant 0.000000e+00 : f32
      %23 = vector.broadcast %cst_12 : f32 to vector<16x128xf32>
      %24 = arith.subf %23, %22 : vector<16x128xf32>
      %25 = math.exp %24 : vector<16x128xf32>
      %cst_13 = arith.constant 1.000000e+00 : f32
      %26 = vector.broadcast %cst_13 : f32 to vector<16x128xf32>
      %27 = arith.addf %26, %25 : vector<16x128xf32>
      %cst_14 = arith.constant 0.000000e+00 : f32
      %28 = vector.broadcast %cst_14 : f32 to vector<16x128xf32>
      %29 = arith.maximumf %19, %28 : vector<16x128xf32>
      %30 = arith.mulf %19, %21 : vector<16x128xf32>
      %31 = arith.subf %29, %30 : vector<16x128xf32>
      %32 = math.log %27 : vector<16x128xf32>
      %33 = arith.addf %31, %32 : vector<16x128xf32>
      %cst_15 = arith.constant 0.000000e+00 : f32
      %34 = vector.broadcast %cst_15 : f32 to vector<16x128xf32>
      %35 = arith.cmpf oge, %19, %34 : vector<16x128xf32>
      %cst_16 = arith.constant 1.000000e+00 : f32
      %36 = vector.broadcast %cst_16 : f32 to vector<16x128xf32>
      %37 = arith.select %35, %36, %25 : vector<16x128xi1>, vector<16x128xf32>
      %38 = tpu.reciprocal %27 : vector<16x128xf32> -> vector<16x128xf32>
      %39 = arith.mulf %37, %38 : vector<16x128xf32>
      %40 = arith.subf %39, %21 : vector<16x128xf32>
      %cst_17 = arith.constant 1.000000e+00 : f32
      %41 = vector.broadcast %cst_17 : f32 to vector<16x128xf32>
      %42 = arith.subf %40, %41 : vector<16x128xf32>
      %cst_18 = arith.constant 19.9600792 : f32
      %43 = vector.broadcast %cst_18 : f32 to vector<16x128xf32>
      %44 = arith.mulf %42, %43 : vector<16x128xf32>
      %45 = math.exp %44 : vector<16x128xf32>
      %cst_19 = arith.constant 1.000000e+00 : f32
      %46 = vector.broadcast %cst_19 : f32 to vector<16x128xf32>
      %47 = arith.subf %46, %45 : vector<16x128xf32>
      %48 = arith.mulf %33, %47 : vector<16x128xf32>
      %49 = vector.shape_cast %48 : vector<16x128xf32> to vector<2x8x128xf32>
      %cst_20 = arith.constant dense<0.000000e+00> : vector<8x128xf32>
      %50 = vector.multi_reduction <add>, %49, %cst_20 [0] : vector<2x8x128xf32> to vector<8x128xf32>
      %51 = arith.addf %6, %50 : vector<8x128xf32>
      %c1_i32_21 = arith.constant 1 : i32
      %52 = arith.addf %15, %51 : vector<8x128xf32>
      %c0_22 = arith.constant 0 : index
      %c0_23 = arith.constant 0 : index
      %53 = vector.load %arg4[%c0_22, %c0_23] : memref<8x128xf32, #tpu.memory_space<vmem>>, vector<8x128xf32>
      tpu.vector_store %arg4[%c0_22, %c0_23], %52 {strides = array<i32>} : memref<8x128xf32, #tpu.memory_space<vmem>>, vector<8x128xf32>,
    } else {
    }
    %c16_i32_4 = arith.constant 16 : i32
    %11 = arith.addi %5, %c16_i32_4 : i32
    %c16_i32_5 = arith.constant 16 : i32
    %12 = arith.cmpi sgt, %11, %c16_i32_5 : i32
    %13 = arith.extui %12 : i1 to i32
    %c0_i32_6 = arith.constant 0 : i32
    %14 = arith.cmpi ne, %13, %c0_i32_6 : i32
    scf.if %14 {
      %c0 = arith.constant 0 : index
      %c0_7 = arith.constant 0 : index
      %15 = vector.load %arg4[%c0, %c0_7] : memref<8x128xf32, #tpu.memory_space<vmem>>, vector<8x128xf32>
      %c0_i32_8 = arith.constant 0 : i32
      %c16_i32_9 = arith.constant 16 : i32
      %16 = arith.muli %c0_i32_8, %c16_i32_9 : i32
      %17 = tpu.assume_multiple %16, 16 : i32
      %18 = arith.index_cast %17 : i32 to index
      %c0_10 = arith.constant 0 : index
      %19 = vector.load %arg2[%18, %c0_10] : memref<16x128xf32, #tpu.memory_space<vmem>>, vector<16x128xf32>
      %20 = arith.index_cast %17 : i32 to index
      %c0_11 = arith.constant 0 : index
      %21 = vector.load %arg3[%20, %c0_11] : memref<16x128xf32, #tpu.memory_space<vmem>>, vector<16x128xf32>
      %22 = math.absf %19 : vector<16x128xf32>
      %cst_12 = arith.constant 0.000000e+00 : f32
      %23 = vector.broadcast %cst_12 : f32 to vector<16x128xf32>
      %24 = arith.subf %23, %22 : vector<16x128xf32>
      %25 = math.exp %24 : vector<16x128xf32>
      %cst_13 = arith.constant 1.000000e+00 : f32
      %26 = vector.broadcast %cst_13 : f32 to vector<16x128xf32>
      %27 = arith.addf %26, %25 : vector<16x128xf32>
      %cst_14 = arith.constant 0.000000e+00 : f32
      %28 = vector.broadcast %cst_14 : f32 to vector<16x128xf32>
      %29 = arith.maximumf %19, %28 : vector<16x128xf32>
      %30 = arith.mulf %19, %21 : vector<16x128xf32>
      %31 = arith.subf %29, %30 : vector<16x128xf32>
      %32 = math.log %27 : vector<16x128xf32>
      %33 = arith.addf %31, %32 : vector<16x128xf32>
      %cst_15 = arith.constant 0.000000e+00 : f32
      %34 = vector.broadcast %cst_15 : f32 to vector<16x128xf32>
      %35 = arith.cmpf oge, %19, %34 : vector<16x128xf32>
      %cst_16 = arith.constant 1.000000e+00 : f32
      %36 = vector.broadcast %cst_16 : f32 to vector<16x128xf32>
      %37 = arith.select %35, %36, %25 : vector<16x128xi1>, vector<16x128xf32>
      %38 = tpu.reciprocal %27 : vector<16x128xf32> -> vector<16x128xf32>
      %39 = arith.mulf %37, %38 : vector<16x128xf32>
      %40 = arith.subf %39, %21 : vector<16x128xf32>
      %cst_17 = arith.constant 1.000000e+00 : f32
      %41 = vector.broadcast %cst_17 : f32 to vector<16x128xf32>
      %42 = arith.subf %40, %41 : vector<16x128xf32>
      %cst_18 = arith.constant 19.9600792 : f32
      %43 = vector.broadcast %cst_18 : f32 to vector<16x128xf32>
      %44 = arith.mulf %42, %43 : vector<16x128xf32>
      %45 = math.exp %44 : vector<16x128xf32>
      %cst_19 = arith.constant 1.000000e+00 : f32
      %46 = vector.broadcast %cst_19 : f32 to vector<16x128xf32>
      %47 = arith.subf %46, %45 : vector<16x128xf32>
      %48 = arith.mulf %33, %47 : vector<16x128xf32>
      %49 = arith.addi %5, %17 : i32
      %c16_i32_20 = arith.constant 16 : i32
      %50 = arith.subi %c16_i32_20, %49 : i32
      %51 = tpu.iota {dimensions = array<i32: 0>} : vector<16x1xi32>
      %52 = vector.broadcast %50 : i32 to vector<16x1xi32>
      %53 = arith.cmpi slt, %51, %52 : vector<16x1xi32>
      %cst_21 = arith.constant 0.000000e+00 : f32
      %54 = vector.shape_cast %53 : vector<16x1xi1> to vector<16x1xi1>
      %55 = vector.broadcast %54 : vector<16x1xi1> to vector<16x128xi1>
      %56 = vector.broadcast %cst_21 : f32 to vector<16x128xf32>
      %57 = arith.select %55, %48, %56 : vector<16x128xi1>, vector<16x128xf32>
      %58 = vector.shape_cast %57 : vector<16x128xf32> to vector<2x8x128xf32>
      %cst_22 = arith.constant dense<0.000000e+00> : vector<8x128xf32>
      %59 = vector.multi_reduction <add>, %58, %cst_22 [0] : vector<2x8x128xf32> to vector<8x128xf32>
      %60 = arith.addf %6, %59 : vector<8x128xf32>
      %c1_i32_23 = arith.constant 1 : i32
      %61 = arith.addf %15, %60 : vector<8x128xf32>
      %c0_24 = arith.constant 0 : index
      %c0_25 = arith.constant 0 : index
      %62 = vector.load %arg4[%c0_24, %c0_25] : memref<8x128xf32, #tpu.memory_space<vmem>>, vector<8x128xf32>
      tpu.vector_store %arg4[%c0_24, %c0_25], %61 {strides = array<i32>} : memref<8x128xf32, #tpu.memory_space<vmem>>, vector<8x128xf32>,
    } else {
    }
    return
  }
  func.func @transform_0(%arg0: i32, %arg1: i32) -> (i32, i32) {
    %c1_i32 = arith.constant 1 : i32
    %0 = arith.muli %arg0, %c1_i32 : i32
    %1 = arith.addi %0, %arg1 : i32
    %c0_i32 = arith.constant 0 : i32
    %2 = arith.minsi %1, %c0_i32 : i32
    %c0_i32_0 = arith.constant 0 : i32
    %c0_i32_1 = arith.constant 0 : i32
    return %2, %c0_i32_0 : i32, i32
  }
  func.func @transform_1(%arg0: i32, %arg1: i32) -> (i32, i32) {
    %c1_i32 = arith.constant 1 : i32
    %0 = arith.muli %arg0, %c1_i32 : i32
    %1 = arith.addi %0, %arg1 : i32
    %c0_i32 = arith.constant 0 : i32
    %2 = arith.minsi %1, %c0_i32 : i32
    %c0_i32_0 = arith.constant 0 : i32
    %c0_i32_1 = arith.constant 0 : i32
    return %2, %c0_i32_0 : i32, i32
  }
  func.func @transform_2(%arg0: i32, %arg1: i32) -> (i32, i32) {
    %c0_i32 = arith.constant 0 : i32
    %c0_i32_0 = arith.constant 0 : i32
    return %arg0, %c0_i32 : i32, i32
  }
}

</mosaic_0001>

<llo_original>
// kernel: bce_blur_with_logits_loss.1
$region0: #{bce_blur_with_logits_loss.1}
  #allocation0 [shape = 'u32[]', space=smem, size = 0x4, offset = 0x4, fixed_abs, tag = 'smem constant byte address 0x4 - core index']
  #allocation1 [shape = 'u32[144,128]{1,0:T(1,128)}', space=vmem, size = 0x12000, scoped, tag = 'internal scratch']
  %s0 = inlined_call_operand.vmem [shape: f32[16,128], index: 0, kind: input, shape index: {}]
  %s1 = inlined_call_operand.vmem [shape: f32[16,128], index: 1, kind: input, shape index: {}]
  %s2 = inlined_call_operand.vmem [shape: f32[8,128], index: 2, kind: output, shape index: {}]
  %s3 = sld [smem:[#allocation0]]
  $region30: #{bce_blur_with_logits_loss.1} parent=0
    _
  %s5 = ssub.s32 1, %s3
  %s6 = scalar_select 0, %s5, %s3
  // Predicated region
  $region2: #{bce_blur_with_logits_loss.1} parent=0 // pred_check
    _
  $region3: #{bce_blur_with_logits_loss.1} parent=0 // pred_check_branch
    %8 = sbr.rel (0) target = $region5
  $region4: #{bce_blur_with_logits_loss.1} parent=0 // pred_region
    %s9 = sadd.s32 0, 0
    %p10 = scmp.lt.s32.totalorder %s9, 0
    %s11 = scalar_select %p10, %s9, 0
    %s12 = smul.u32 2, %s11
    %p13 = scmp.lt.s32.totalorder %s12, 1
    %s14 = scalar_select %p13, %s12, 1
    %s15 = smul.addr %s14, 8
    %s16 = scalar_lea.vmem %s0, %s15
    %s17 = sadd.s32 0, 0
    %p18 = scmp.lt.s32.totalorder %s17, 0
    %s19 = scalar_select %p18, %s17, 0
    %s20 = smul.u32 2, %s19
  $region5: #{bce_blur_with_logits_loss.1} parent=0 // pred_fallthru
    _
  // Predicated region
  $region6: #{bce_blur_with_logits_loss.1} parent=0 // pred_check
    _
  $region7: #{bce_blur_with_logits_loss.1} parent=0 // pred_check_branch
    %22 = sbr.rel (0) target = $region9
  $region8: #{bce_blur_with_logits_loss.1} parent=0 // pred_region
    %s23 = sadd.s32 0, 0
    %p24 = scmp.lt.s32.totalorder %s23, 0
    %s25 = scalar_select %p24, %s23, 0
    %s26 = smul.u32 2, %s25
    %p27 = scmp.lt.s32.totalorder %s26, 1
    %s28 = scalar_select %p27, %s26, 1
    %s29 = smul.addr %s28, 8
    %s30 = scalar_lea.vmem %s1, %s29
    %s31 = sadd.s32 0, 0
    %p32 = scmp.lt.s32.totalorder %s31, 0
    %s33 = scalar_select %p32, %s31, 0
    %s34 = smul.u32 2, %s33
  $region9: #{bce_blur_with_logits_loss.1} parent=0 // pred_fallthru
    _
  %s35 = sadd.s32 0, 0
  %p36 = scmp.lt.s32.totalorder %s35, 0
  %s37 = scalar_select %p36, %s35, 0
  %s38 = smul.u32 2, %s37
  %p39 = scmp.lt.s32.totalorder %s38, 1
  %s40 = scalar_select %p39, %s38, 1
  %s41 = smul.addr %s40, 8
  %s42 = scalar_lea.vmem %s0, %s41
  %s43 = sadd.s32 0, 0
  %p44 = scmp.lt.s32.totalorder %s43, 0
  %s45 = scalar_select %p44, %s43, 0
  %s46 = smul.u32 2, %s45
  %p47 = scmp.lt.s32.totalorder %s46, 1
  %s48 = scalar_select %p47, %s46, 1
  %s49 = smul.addr %s48, 8
  %s50 = scalar_lea.vmem %s1, %s49
  %s51 = sadd.s32 0, 0
  %p52 = scmp.lt.s32.totalorder %s51, 0
  %s53 = scalar_select %p52, %s51, 0
  %s54 = smul.u32 2, %s53
  %p55 = scmp.lt.s32.totalorder %s54, 1
  %s56 = scalar_select %p55, %s54, 1
  %s57 = smul.addr %s56, 8
  %s58 = scalar_lea.vmem %s0, %s57
  %s59 = sadd.s32 0, 0
  %p60 = scmp.lt.s32.totalorder %s59, 0
  %s61 = scalar_select %p60, %s59, 0
  %s62 = smul.u32 2, %s61
  %s63 = sadd.s32 0, 0
  %p64 = scmp.lt.s32.totalorder %s63, 0
  %s65 = scalar_select %p64, %s63, 0
  %s66 = smul.u32 2, %s65
  %p67 = scmp.lt.s32.totalorder %s66, 1
  %s68 = scalar_select %p67, %s66, 1
  %s69 = smul.addr %s68, 8
  %s70 = scalar_lea.vmem %s1, %s69
  %s71 = sadd.s32 0, 0
  %p72 = scmp.lt.s32.totalorder %s71, 0
  %s73 = scalar_select %p72, %s71, 0
  %s74 = smul.u32 2, %s73
  %p75 = scmp.eq.s32.totalorder 0, 0
  // Predicated region
  $region10: #{bce_blur_with_logits_loss.1} parent=0 // pred_check
    %p76 = pneg %p75
  $region11: #{bce_blur_with_logits_loss.1} parent=0 // pred_check_branch
    %78 = sbr.rel (%p76) target = $region13
  $region12: #{bce_blur_with_logits_loss.1} parent=0 // pred_region
    %79 = vst [vmem:[%s2] sm:$0xff] 0.0
  $region13: #{bce_blur_with_logits_loss.1} parent=0 // pred_fallthru
    _
  %s80 = sadd.s32 0, 0
  %s81 = smul.u32 %s80, 16
  %s82 = sadd.s32 %s81, 16
  %p83 = scmp.le.s32.totalorder %s82, 16
  // Predicated region
  $region14: #{bce_blur_with_logits_loss.1} parent=0 // pred_check
    %p84 = pneg %p83
  $region15: #{bce_blur_with_logits_loss.1} parent=0 // pred_check_branch
    %86 = sbr.rel (%p84) target = $region17
  $region16: #{bce_blur_with_logits_loss.1} parent=0 // pred_region
    %v87 = vld [vmem:[%s2] sm:$0xff]
    %v88 = vld [vmem:[%s58] sm:$0xff]
    %v89 = vld [vmem:[%s58 + $0x8] sm:$0xff]
    %v90 = vld [vmem:[%s70] sm:$0xff]
    %v91 = vld [vmem:[%s70 + $0x8] sm:$0xff]
    %v92 = vand.u32 2147483647, %v88
    %v93 = vand.u32 2147483647, %v89
    %v94 = vsub.f32 0.0, %v92
    %v95 = vsub.f32 0.0, %v93
    %v96 = vmul.f32 %v94, 1.442695
    %v97 = vpow.pop %v96
    %v98 = vmul.f32 %v95, 1.442695
    %v99 = vpow.pop %v98
    %v100 = vadd.f32 %v97, 1.0
    %v101 = vadd.f32 %v99, 1.0
    %v102 = vmax.f32 %v88, 0.0
    %v103 = vmax.f32 %v89, 0.0
    %v104 = vmul.f32 %v88, %v90
    %v105 = vmul.f32 %v89, %v91
    %v106 = vsub.f32 %v102, %v104
    %v107 = vsub.f32 %v103, %v105
    %v108 = vlog2.pop %v100
    %v109 = vmul.f32 %v108, 0.6931472
    %v110 = vlog2.pop %v101
    %v111 = vmul.f32 %v110, 0.6931472
    %v112 = vadd.f32 %v106, %v109
    %v113 = vadd.f32 %v107, %v111
    %vm114 = vcmp.ge.f32.partialorder %v88, 0.0
    %vm115 = vcmp.ge.f32.partialorder %v89, 0.0
    %v116 = vsel %vm114, 1.0, %v97
    %v117 = vsel %vm115, 1.0, %v99
    %v118 = vrcp.pop %v100
    %v119 = vrcp.pop %v101
    %v120 = vmul.f32 %v116, %v118
    %v121 = vmul.f32 %v117, %v119
    %v122 = vsub.f32 %v120, %v90
    %v123 = vsub.f32 %v121, %v91
    %v124 = vsub.f32 %v122, 1.0
    %v125 = vsub.f32 %v123, 1.0
    %v126 = vmul.f32 %v124, 19.96008
    %v127 = vmul.f32 %v125, 19.96008
    %v128 = vmul.f32 %v126, 1.442695
    %v129 = vpow.pop %v128
    %v130 = vmul.f32 %v127, 1.442695
    %v131 = vpow.pop %v130
    %v132 = vsub.f32 1.0, %v129
    %v133 = vsub.f32 1.0, %v131
    %v134 = vmul.f32 %v112, %v132
    %v135 = vmul.f32 %v113, %v133
    %v136 = vadd.f32 %v134, %v135
    %v137 = vadd.f32 %v136, 0.0
    %v138 = vadd.f32 %v87, %v137
    %139 = vst [vmem:[%s2] sm:$0xff] %v138
  $region17: #{bce_blur_with_logits_loss.1} parent=0 // pred_fallthru
    _
  %p140 = scmp.gt.s32.totalorder %s82, 16
  // Predicated region
  $region18: #{bce_blur_with_logits_loss.1} parent=0 // pred_check
    %p141 = pneg %p140
  $region19: #{bce_blur_with_logits_loss.1} parent=0 // pred_check_branch
    %143 = sbr.rel (%p141) target = $region21
  $region20: #{bce_blur_with_logits_loss.1} parent=0 // pred_region
    %v144 = vld [vmem:[%s2] sm:$0xff]
    %v145 = vld [vmem:[%s58] sm:$0xff]
    %v146 = vld [vmem:[%s58 + $0x8] sm:$0xff]
    %v147 = vld [vmem:[%s70] sm:$0xff]
    %v148 = vld [vmem:[%s70 + $0x8] sm:$0xff]
    %v149 = vand.u32 2147483647, %v145
    %v150 = vand.u32 2147483647, %v146
    %v151 = vsub.f32 0.0, %v149
    %v152 = vsub.f32 0.0, %v150
    %v153 = vmul.f32 %v151, 1.442695
    %v154 = vpow.pop %v153
    %v155 = vmul.f32 %v152, 1.442695
    %v156 = vpow.pop %v155
    %v157 = vadd.f32 %v154, 1.0
    %v158 = vadd.f32 %v156, 1.0
    %v159 = vmax.f32 %v145, 0.0
    %v160 = vmax.f32 %v146, 0.0
    %v161 = vmul.f32 %v145, %v147
    %v162 = vmul.f32 %v146, %v148
    %v163 = vsub.f32 %v159, %v161
    %v164 = vsub.f32 %v160, %v162
    %v165 = vlog2.pop %v157
    %v166 = vmul.f32 %v165, 0.6931472
    %v167 = vlog2.pop %v158
    %v168 = vmul.f32 %v167, 0.6931472
    %v169 = vadd.f32 %v163, %v166
    %v170 = vadd.f32 %v164, %v168
    %vm171 = vcmp.ge.f32.partialorder %v145, 0.0
    %vm172 = vcmp.ge.f32.partialorder %v146, 0.0
    %v173 = vsel %vm171, 1.0, %v154
    %v174 = vsel %vm172, 1.0, %v156
    %v175 = vrcp.pop %v157
    %v176 = vrcp.pop %v158
    %v177 = vmul.f32 %v173, %v175
    %v178 = vmul.f32 %v174, %v176
    %v179 = vsub.f32 %v177, %v147
    %v180 = vsub.f32 %v178, %v148
    %v181 = vsub.f32 %v179, 1.0
    %v182 = vsub.f32 %v180, 1.0
    %v183 = vmul.f32 %v181, 19.96008
    %v184 = vmul.f32 %v182, 19.96008
    %v185 = vmul.f32 %v183, 1.442695
    %v186 = vpow.pop %v185
    %v187 = vmul.f32 %v184, 1.442695
    %v188 = vpow.pop %v187
    %v189 = vsub.f32 1.0, %v186
    %v190 = vsub.f32 1.0, %v188
    %v191 = vmul.f32 %v169, %v189
    %v192 = vmul.f32 %v170, %v190
    %s193 = sadd.s32 %s81, 0
    %s194 = ssub.s32 16, %s193
    %v195 = vlaneseq
    %v196 = vshrl.u32 %v195, 7
    %v197 = vadd.s32 %v196, 8
    %v198 = vstv %s194
    %vm199 = vcmp.lt.s32.totalorder %v196, %v198
    %vm200 = vcmp.lt.s32.totalorder %v197, %v198
    %v201 = vsel %vm199, 1, 0
    %v202 = vsel %vm200, 1, 0
    %vm203 = vcmp.eq.s32.totalorder %v201, 1
    %vm204 = vcmp.eq.s32.totalorder %v202, 1
    %v205 = vsel %vm203, %v191, 0.0
    %v206 = vsel %vm204, %v192, 0.0
    %v207 = vadd.f32 %v205, %v206
    %v208 = vadd.f32 %v207, 0.0
    %v209 = vadd.f32 %v144, %v208
    %210 = vst [vmem:[%s2] sm:$0xff] %v209
  $region21: #{bce_blur_with_logits_loss.1} parent=0 // pred_fallthru
    _
  // Predicated region
  $region22: #{bce_blur_with_logits_loss.1} parent=0 // pred_check
    _
  $region23: #{bce_blur_with_logits_loss.1} parent=0 // pred_check_branch
    %212 = sbr.rel (0) target = $region25
  $region24: #{bce_blur_with_logits_loss.1} parent=0 // pred_region
    _
  $region25: #{bce_blur_with_logits_loss.1} parent=0 // pred_fallthru
    _
  // Predicated region
  $region26: #{bce_blur_with_logits_loss.1} parent=0 // pred_check
    _
  $region27: #{bce_blur_with_logits_loss.1} parent=0 // pred_check_branch
    %214 = sbr.rel (0) target = $region29
  $region28: #{bce_blur_with_logits_loss.1} parent=0 // pred_region
    _
  $region29: #{bce_blur_with_logits_loss.1} parent=0 // pred_fallthru
    _

</llo_original>
